<compile_context>
chip_gen: v6e
topology: v6e:2x2x1
jax: 0.10.0
libtpu: 0.0.40
codegen_flags: <defaults>
</compile_context>

<pallas_src>
import functools
import math

import jax
import jax.numpy as jnp
from jax import lax
from jax.experimental import pallas as pl
from jax.experimental.pallas import tpu as pltpu

_EPS = 1e-8                      # PyTorch default eps for F.cosine_similarity
_MIB = 1024 * 1024

_WHOLE_BLOCK_TARGET = 4 * _MIB   # block target for paths with full-block f32 temporaries
_MULTI_K_TILE_D = 4096           # lane width per k-step when streaming the feature axis
_MAX_UNROLLED_CHUNKS = 64        # max statically unrolled 128-lane chunks per grid step
_MAX_TILE_R = 4096               # bounds per-chunk f32 temps / accumulators (~2 MiB each)


def _round_up(x, m):
    return ((x + m - 1) // m) * m


def _padded_vmem_elems(shape):
    """Element count of a VMEM-resident array including (8, 128) minor-tile padding."""
    s = list(shape)
    if len(s) == 1:
        return _round_up(s[0], 128)
    s[-1] = _round_up(s[-1], 128)
    s[-2] = _round_up(s[-2], 8)
    return math.prod(s)


def _f32(v):
    return v if v.dtype == jnp.float32 else v.astype(jnp.float32)


@functools.lru_cache(maxsize=1)
def _tpu_memory_config():
    """(per-input block byte target, scoped vmem_limit_bytes), generation-aware."""
    vmem_cap = None
    try:
        vmem_cap = int(pltpu.get_tpu_info().vmem_capacity_bytes)
    except Exception:
        vmem_cap = None
    if vmem_cap is None or vmem_cap <= 64 * _MIB:
        # v7x-class: 64 MiB VMEM, ~3.2 TB/s HBM -> big blocks, tight ceiling.
        # (Also the safe fallback if the query is unavailable.)
        return 6 * _MIB, 48 * _MIB
    # v5e / v6e class: 128 MiB VMEM.
    return 8 * _MIB, 64 * _MIB


# --------------------------------------------------------------------------------------
# Kernel 1: rank-2 inputs (batch rows on sublanes, feature/reduction axis on lanes).
# grid = (row_tiles [parallel], feature_tiles [arbitrary, reduction axis last])
# --------------------------------------------------------------------------------------
def _cosine_rows_kernel(x_ref, y_ref, o_ref, dot_acc, xx_acc, yy_acc, *,
                        d_valid, tile_d, chunked, needs_mask):
    k = pl.program_id(1)

    @pl.when(k == 0)
    def _init():
        dot_acc[...] = jnp.zeros_like(dot_acc)
        xx_acc[...] = jnp.zeros_like(xx_acc)
        yy_acc[...] = jnp.zeros_like(yy_acc)

    def _masked(xs, ys, lane_off):
        if not needs_mask:
            return xs, ys
        col = (k * tile_d + lane_off
               + lax.broadcasted_iota(jnp.int32, xs.shape, xs.ndim - 1))
        valid = col < d_valid
        return jnp.where(valid, xs, 0.0), jnp.where(valid, ys, 0.0)

    if chunked:
        # Lane-partial accumulation: pure VALU adds in the hot loop.  The single
        # cross-lane reduction happens once per row tile in the finalize below,
        # keeping the XLU out of the DMA-bound inner loop (matters on v7x).
        for c in range(tile_d // 128):
            xs = _f32(x_ref[:, c * 128:(c + 1) * 128])
            ys = _f32(y_ref[:, c * 128:(c + 1) * 128])
            xs, ys = _masked(xs, ys, c * 128)
            dot_acc[...] += xs * ys
            xx_acc[...] += xs * xs
            yy_acc[...] += ys * ys
    else:
        xs = _f32(x_ref[...])
        ys = _f32(y_ref[...])
        xs, ys = _masked(xs, ys, 0)
        dot_acc[...] += jnp.sum(xs * ys, axis=-1, keepdims=True)
        xx_acc[...] += jnp.sum(xs * xs, axis=-1, keepdims=True)
        yy_acc[...] += jnp.sum(ys * ys, axis=-1, keepdims=True)

    @pl.when(k == pl.num_programs(1) - 1)
    def _finalize():
        if chunked:
            dot = jnp.sum(dot_acc[...], axis=-1, keepdims=True)
            xx = jnp.sum(xx_acc[...], axis=-1, keepdims=True)
            yy = jnp.sum(yy_acc[...], axis=-1, keepdims=True)
        else:
            dot, xx, yy = dot_acc[...], xx_acc[...], yy_acc[...]
        # 1 - dot/max(||x||*||y||, eps) == 1 - dot * rsqrt(max(|x|^2*|y|^2, eps^2))
        inv = lax.rsqrt(jnp.maximum(xx * yy, _EPS * _EPS))
        o_ref[...] = (1.0 - dot * inv).astype(o_ref.dtype)


def _cosine_distance_rows(x2d, y2d, out_dtype, *, block_bytes, vmem_limit,
                          tile_r=None, tile_d=None):
    R, D = x2d.shape
    R8 = _round_up(max(R, 1), 8)
    itemsize = x2d.dtype.itemsize

    # ---- feature-axis strategy ----
    if tile_d is None:
        if (D % 128 == 0 and D // 128 <= _MAX_UNROLLED_CHUNKS
                and 8 * D * itemsize <= block_bytes):
            tile_d, chunked = D, True                   # single k step, chunked compute
            budget, row_itemsize = block_bytes, itemsize
        elif 8 * _round_up(D, 128) * 4 <= _WHOLE_BLOCK_TARGET:
            tile_d, chunked = D, False                  # small / unaligned feature axis
            budget, row_itemsize = _WHOLE_BLOCK_TARGET, 4   # whole-block f32 temps
        else:
            tile_d, chunked = _MULTI_K_TILE_D, True     # stream the feature axis
            budget, row_itemsize = block_bytes, itemsize
    else:
        if tile_d < D and tile_d % 128 != 0:
            raise ValueError("tile_d must be a multiple of 128 when tiling the feature axis")
        chunked = (tile_d % 128 == 0) and (tile_d // 128 <= _MAX_UNROLLED_CHUNKS)
        budget = block_bytes if chunked else min(block_bytes, _WHOLE_BLOCK_TARGET)
        row_itemsize = itemsize if chunked else 4

    needs_mask = (D % tile_d) != 0
    num_k = pl.cdiv(D, tile_d)

    # ---- row tile: fill the byte budget (VMEM rows are lane-padded to 128) ----
    if tile_r is None:
        row_bytes = _round_up(tile_d, 128) * row_itemsize
        tile_r = max(8, (budget // row_bytes) // 8 * 8)
        tile_r = min(tile_r, _MAX_TILE_R, R8)
        if R8 >= 16:
            # keep >= 2 row tiles so both v7x TensorCores get work (free elsewhere)
            tile_r = min(tile_r, _round_up(-(-R8 // 2), 8))
    if tile_r % 8 != 0:
        raise ValueError("tile_r must be a multiple of 8")

    acc_lanes = 128 if chunked else 1
    grid = (pl.cdiv(R, tile_r), num_k)

    kernel = functools.partial(_cosine_rows_kernel, d_valid=D, tile_d=tile_d,
                               chunked=chunked, needs_mask=needs_mask)
    out = pl.pallas_call(
        kernel,
        out_shape=jax.ShapeDtypeStruct((R, 1), out_dtype),
        grid_spec=pltpu.PrefetchScalarGridSpec(
            num_scalar_prefetch=0,
            grid=grid,
            in_specs=[
                pl.BlockSpec((tile_r, tile_d), lambda i, k: (i, k)),
                pl.BlockSpec((tile_r, tile_d), lambda i, k: (i, k)),
            ],
            out_specs=pl.BlockSpec((tile_r, 1), lambda i, k: (i, 0)),
            scratch_shapes=[pltpu.VMEM((tile_r, acc_lanes), jnp.float32)
                            for _ in range(3)],
        ),
        compiler_params=pltpu.CompilerParams(
            dimension_semantics=("parallel", "arbitrary"),
            vmem_limit_bytes=vmem_limit,
        ),
    )(x2d, y2d)
    return out.reshape(R)


# --------------------------------------------------------------------------------------
# Kernel 2: rank>2 inputs kept in their NATIVE (N, C, *spatial) layout (no reshape, no
# transpose).  Blocks batch the N axis to hit the byte target; the channel reduction is
# plain VPU multiply-adds; outputs are stored with full (lane-dense) trailing dims.
# --------------------------------------------------------------------------------------
def _cosine_channels_kernel(x_ref, y_ref, o_ref):
    x = _f32(x_ref[...])                         # (tile_n, C, *spatial)
    y = _f32(y_ref[...])
    C = x.shape[1]
    if C <= 32:
        # Unrolled channel loop: pure VALU multiply-adds over (tile_n, 1, *spatial) slices.
        dot = x[:, 0:1] * y[:, 0:1]
        xx = x[:, 0:1] * x[:, 0:1]
        yy = y[:, 0:1] * y[:, 0:1]
        for c in range(1, C):
            xs = x[:, c:c + 1]
            ys = y[:, c:c + 1]
            dot = dot + xs * ys
            xx = xx + xs * xs
            yy = yy + ys * ys
    else:
        dot = jnp.sum(x * y, axis=1, keepdims=True)
        xx = jnp.sum(x * x, axis=1, keepdims=True)
        yy = jnp.sum(y * y, axis=1, keepdims=True)
    inv = lax.rsqrt(jnp.maximum(xx * yy, _EPS * _EPS))
    o_ref[...] = (1.0 - dot * inv).astype(o_ref.dtype)


def _cosine_distance_channels(x, y, out_dtype, *, block_bytes, vmem_limit, tile_n=None):
    shape = x.shape
    ndim = x.ndim
    N, rest = shape[0], shape[2:]
    # Whole-sample f32 temporaries live in VMEM -> budget at 4 B/elt with lane padding.
    per_sample = _padded_vmem_elems(shape[1:]) * 4
    target = min(block_bytes, _WHOLE_BLOCK_TARGET)

    if tile_n is None:
        tile_n = max(1, target // per_sample)
        if N >= 16:
            tile_n = min(tile_n, -(-N // 2))     # >= 2 tiles keeps both v7x TCs busy
        tile_n = min(tile_n, N)

    if tile_n * per_sample * 8 > vmem_limit:
        # TODO(synk): tile the channel / trailing axes for very large per-sample blocks.
        raise ValueError(
            "cosine_distance: a ({}, C, *spatial) block (~{} B as f32) does not fit the "
            "VMEM budget; reduce the per-sample size or add trailing-axis tiling."
            .format(tile_n, tile_n * per_sample))

    in_zeros = (0,) * (ndim - 1)
    out_zeros = (0,) * (ndim - 2)
    in_spec = pl.BlockSpec((tile_n,) + shape[1:], lambda n: (n,) + in_zeros)
    out_spec = pl.BlockSpec((tile_n, 1) + rest, lambda n: (n, 0) + out_zeros)

    out = pl.pallas_call(
        _cosine_channels_kernel,
        out_shape=jax.ShapeDtypeStruct((N, 1) + rest, out_dtype),
        grid_spec=pltpu.PrefetchScalarGridSpec(
            num_scalar_prefetch=0,
            grid=(pl.cdiv(N, tile_n),),
            in_specs=[in_spec, in_spec],
            out_specs=out_spec,
        ),
        compiler_params=pltpu.CompilerParams(
            dimension_semantics=("parallel",),
            vmem_limit_bytes=vmem_limit,
        ),
    )(x, y)
    return out.reshape((N,) + rest)


# --------------------------------------------------------------------------------------
# Public wrapper == CosineDistance.forward
# --------------------------------------------------------------------------------------
def cosine_distance(x, y, *, tile_r=None, tile_d=None, tile_n=None):
    """Pallas TPU equivalent of `1 - F.cosine_similarity(x, y)` (dim=1, eps=1e-8)."""
    if x.shape != y.shape:
        raise ValueError("x and y must have the same shape (broadcasting not implemented)")
    if x.ndim < 2:
        raise ValueError("cosine_similarity(dim=1) needs inputs of rank >= 2")
    out_dtype = jnp.promote_types(x.dtype, y.dtype)
    x = x.astype(out_dtype)
    y = y.astype(out_dtype)
    block_bytes, vmem_limit = _tpu_memory_config()

    if x.ndim == 2:
        return _cosine_distance_rows(x, y, out_dtype, block_bytes=block_bytes,
                                     vmem_limit=vmem_limit, tile_r=tile_r, tile_d=tile_d)
    return _cosine_distance_channels(x, y, out_dtype, block_bytes=block_bytes,
                                     vmem_limit=vmem_limit, tile_n=tile_n)


if __name__ == "__main__":
    key = jax.random.PRNGKey(0)
    keys = jax.random.split(key, 10)

    def ref_cosine_distance(x, y):
        xf, yf = x.astype(jnp.float32), y.astype(jnp.float32)
        dot = jnp.sum(xf * yf, axis=1)
        denom = jnp.maximum(jnp.linalg.norm(xf, axis=1) * jnp.linalg.norm(yf, axis=1), _EPS)
        return 1.0 - dot / denom

    # 1) Typical embedding pair for this loss: (batch=8, hidden=32), single tile.
    x1 = jax.random.normal(keys[0], (8, 32), jnp.float32)
    y1 = jax.random.normal(keys[1], (8, 32), jnp.float32)
    d1 = jax.block_until_ready(cosine_distance(x1, y1))
    assert d1.shape == (8,)
    assert jnp.allclose(d1, ref_cosine_distance(x1, y1), atol=1e-5, rtol=1e-5)

    # 2) Auto plan: multiple row tiles (partial last one), single feature step.
    x2 = jax.random.normal(keys[2], (300, 200), jnp.float32)
    y2 = jax.random.normal(keys[3], (300, 200), jnp.float32)
    d2 = jax.block_until_ready(cosine_distance(x2, y2))
    assert d2.shape == (300,)
    assert jnp.allclose(d2, ref_cosine_distance(x2, y2), atol=1e-5, rtol=1e-5)

    # 3) Forced feature-axis streaming: lane-partial accumulators + in-kernel masking
    #    of the ragged last feature block (200 % 128 != 0) — no jnp.pad.
    d3 = jax.block_until_ready(cosine_distance(x2, y2, tile_r=64, tile_d=128))
    assert jnp.allclose(d3, ref_cosine_distance(x2, y2), atol=1e-5, rtol=1e-5)

    # 4) bf16 inputs: chunked path, real-itemsize block budgeting, bf16 output.
    x4 = jax.random.normal(keys[4], (8, 256), jnp.bfloat16)
    y4 = jax.random.normal(keys[5], (8, 256), jnp.bfloat16)
    d4 = jax.block_until_ready(cosine_distance(x4, y4))
    assert d4.dtype == jnp.bfloat16
    assert jnp.allclose(d4.astype(jnp.float32), ref_cosine_distance(x4, y4),
                        atol=2e-2, rtol=2e-2)

    # 5) Rank-4 (N, C, H, W): native-layout channel reduction, no reshape/transpose.
    x5 = jax.random.normal(keys[6], (2, 4, 16, 16), jnp.float32)
    y5 = jax.random.normal(keys[7], (2, 4, 16, 16), jnp.float32)
    d5 = jax.block_until_ready(cosine_distance(x5, y5))
    assert d5.shape == (2, 16, 16)
    ref5 = 1.0 - jnp.sum(x5 * y5, axis=1) / jnp.maximum(
        jnp.linalg.norm(x5, axis=1) * jnp.linalg.norm(y5, axis=1), _EPS)
    assert jnp.allclose(d5, ref5, atol=1e-5, rtol=1e-5)

    # 6) Rank-3 (N, C, T) with several batched N tiles.
    x6 = jax.random.normal(keys[8], (16, 4, 100), jnp.float32)
    y6 = jax.random.normal(keys[9], (16, 4, 100), jnp.float32)
    d6 = jax.block_until_ready(cosine_distance(x6, y6, tile_n=4))
    assert d6.shape == (16, 100)
    ref6 = 1.0 - jnp.sum(x6 * y6, axis=1) / jnp.maximum(
        jnp.linalg.norm(x6, axis=1) * jnp.linalg.norm(y6, axis=1), _EPS)
    assert jnp.allclose(d6, ref6, atol=1e-5, rtol=1e-5)

    print("KERNEL_OK")
</pallas_src>

<mosaic_0001>
module attributes {stable_mosaic.version = 11 : i64} {
  func.func @_cosine_rows_kernel(%arg0: i32, %arg1: i32, %arg2: memref<8x32xf32, #tpu.memory_space<vmem>>, %arg3: memref<8x32xf32, #tpu.memory_space<vmem>>, %arg4: memref<8x1xf32, #tpu.memory_space<vmem>>, %arg5: memref<8x1xf32, #tpu.memory_space<vmem>>, %arg6: memref<8x1xf32, #tpu.memory_space<vmem>>, %arg7: memref<8x1xf32, #tpu.memory_space<vmem>>) attributes {dimension_semantics = [#tpu.dimension_semantics<parallel>, #tpu.dimension_semantics<arbitrary>], iteration_bounds = array<i64: 1, 1>, scalar_prefetch = 0 : i64, scratch_operands = 3 : i64, tpu.core_type = #tpu.core_type<tc>, window_params = [{transform_indices = @transform_0, window_bounds = array<i64: 8, 32>}, {transform_indices = @transform_1, window_bounds = array<i64: 8, 32>}, {transform_indices = @transform_2, window_bounds = array<i64: 8, 1>}]} {
    %c0_i32 = arith.constant 0 : i32
    %0 = arith.cmpi eq, %arg1, %c0_i32 : i32
    %1 = arith.extui %0 : i1 to i32
    %c0_i32_0 = arith.constant 0 : i32
    %2 = arith.cmpi ne, %1, %c0_i32_0 : i32
    scf.if %2 {
      %cst_20 = arith.constant 0.000000e+00 : f32
      %26 = vector.broadcast %cst_20 : f32 to vector<8x1xf32>
      %c0_21 = arith.constant 0 : index
      %c0_22 = arith.constant 0 : index
      %27 = vector.load %arg5[%c0_21, %c0_22] : memref<8x1xf32, #tpu.memory_space<vmem>>, vector<8x1xf32>
      tpu.vector_store %arg5[%c0_21, %c0_22], %26 {strides = array<i32>} : memref<8x1xf32, #tpu.memory_space<vmem>>, vector<8x1xf32>,
      %cst_23 = arith.constant 0.000000e+00 : f32
      %28 = vector.broadcast %cst_23 : f32 to vector<8x1xf32>
      %c0_24 = arith.constant 0 : index
      %c0_25 = arith.constant 0 : index
      %29 = vector.load %arg6[%c0_24, %c0_25] : memref<8x1xf32, #tpu.memory_space<vmem>>, vector<8x1xf32>
      tpu.vector_store %arg6[%c0_24, %c0_25], %28 {strides = array<i32>} : memref<8x1xf32, #tpu.memory_space<vmem>>, vector<8x1xf32>,
      %cst_26 = arith.constant 0.000000e+00 : f32
      %30 = vector.broadcast %cst_26 : f32 to vector<8x1xf32>
      %c0_27 = arith.constant 0 : index
      %c0_28 = arith.constant 0 : index
      %31 = vector.load %arg7[%c0_27, %c0_28] : memref<8x1xf32, #tpu.memory_space<vmem>>, vector<8x1xf32>
      tpu.vector_store %arg7[%c0_27, %c0_28], %30 {strides = array<i32>} : memref<8x1xf32, #tpu.memory_space<vmem>>, vector<8x1xf32>,
    } else {
    }
    %c0 = arith.constant 0 : index
    %c0_1 = arith.constant 0 : index
    %3 = vector.load %arg2[%c0, %c0_1] : memref<8x32xf32, #tpu.memory_space<vmem>>, vector<8x32xf32>
    %c0_2 = arith.constant 0 : index
    %c0_3 = arith.constant 0 : index
    %4 = vector.load %arg3[%c0_2, %c0_3] : memref<8x32xf32, #tpu.memory_space<vmem>>, vector<8x32xf32>
    %c0_4 = arith.constant 0 : index
    %c0_5 = arith.constant 0 : index
    %5 = vector.load %arg5[%c0_4, %c0_5] : memref<8x1xf32, #tpu.memory_space<vmem>>, vector<8x1xf32>
    %6 = arith.mulf %3, %4 : vector<8x32xf32>
    %cst = arith.constant dense<0.000000e+00> : vector<8xf32>
    %7 = vector.multi_reduction <add>, %6, %cst [1] : vector<8x32xf32> to vector<8xf32>
    %8 = vector.shape_cast %7 : vector<8xf32> to vector<8x1xf32>
    %9 = arith.addf %5, %8 : vector<8x1xf32>
    %c0_6 = arith.constant 0 : index
    %c0_7 = arith.constant 0 : index
    %10 = vector.load %arg5[%c0_6, %c0_7] : memref<8x1xf32, #tpu.memory_space<vmem>>, vector<8x1xf32>
    tpu.vector_store %arg5[%c0_6, %c0_7], %9 {strides = array<i32>} : memref<8x1xf32, #tpu.memory_space<vmem>>, vector<8x1xf32>,
    %c0_8 = arith.constant 0 : index
    %c0_9 = arith.constant 0 : index
    %11 = vector.load %arg6[%c0_8, %c0_9] : memref<8x1xf32, #tpu.memory_space<vmem>>, vector<8x1xf32>
    %12 = arith.mulf %3, %3 : vector<8x32xf32>
    %cst_10 = arith.constant dense<0.000000e+00> : vector<8xf32>
    %13 = vector.multi_reduction <add>, %12, %cst_10 [1] : vector<8x32xf32> to vector<8xf32>
    %14 = vector.shape_cast %13 : vector<8xf32> to vector<8x1xf32>
    %15 = arith.addf %11, %14 : vector<8x1xf32>
    %c0_11 = arith.constant 0 : index
    %c0_12 = arith.constant 0 : index
    %16 = vector.load %arg6[%c0_11, %c0_12] : memref<8x1xf32, #tpu.memory_space<vmem>>, vector<8x1xf32>
    tpu.vector_store %arg6[%c0_11, %c0_12], %15 {strides = array<i32>} : memref<8x1xf32, #tpu.memory_space<vmem>>, vector<8x1xf32>,
    %c0_13 = arith.constant 0 : index
    %c0_14 = arith.constant 0 : index
    %17 = vector.load %arg7[%c0_13, %c0_14] : memref<8x1xf32, #tpu.memory_space<vmem>>, vector<8x1xf32>
    %18 = arith.mulf %4, %4 : vector<8x32xf32>
    %cst_15 = arith.constant dense<0.000000e+00> : vector<8xf32>
    %19 = vector.multi_reduction <add>, %18, %cst_15 [1] : vector<8x32xf32> to vector<8xf32>
    %20 = vector.shape_cast %19 : vector<8xf32> to vector<8x1xf32>
    %21 = arith.addf %17, %20 : vector<8x1xf32>
    %c0_16 = arith.constant 0 : index
    %c0_17 = arith.constant 0 : index
    %22 = vector.load %arg7[%c0_16, %c0_17] : memref<8x1xf32, #tpu.memory_space<vmem>>, vector<8x1xf32>
    tpu.vector_store %arg7[%c0_16, %c0_17], %21 {strides = array<i32>} : memref<8x1xf32, #tpu.memory_space<vmem>>, vector<8x1xf32>,
    %c0_i32_18 = arith.constant 0 : i32
    %23 = arith.cmpi eq, %arg1, %c0_i32_18 : i32
    %24 = arith.extui %23 : i1 to i32
    %c0_i32_19 = arith.constant 0 : i32
    %25 = arith.cmpi ne, %24, %c0_i32_19 : i32
    scf.if %25 {
      %c0_20 = arith.constant 0 : index
      %c0_21 = arith.constant 0 : index
      %26 = vector.load %arg5[%c0_20, %c0_21] : memref<8x1xf32, #tpu.memory_space<vmem>>, vector<8x1xf32>
      %c0_22 = arith.constant 0 : index
      %c0_23 = arith.constant 0 : index
      %27 = vector.load %arg6[%c0_22, %c0_23] : memref<8x1xf32, #tpu.memory_space<vmem>>, vector<8x1xf32>
      %c0_24 = arith.constant 0 : index
      %c0_25 = arith.constant 0 : index
      %28 = vector.load %arg7[%c0_24, %c0_25] : memref<8x1xf32, #tpu.memory_space<vmem>>, vector<8x1xf32>
      %29 = arith.mulf %27, %28 : vector<8x1xf32>
      %cst_26 = arith.constant 1.000000e-16 : f32
      %30 = vector.broadcast %cst_26 : f32 to vector<8x1xf32>
      %31 = arith.maximumf %29, %30 : vector<8x1xf32>
      %32 = math.rsqrt %31 : vector<8x1xf32>
      %33 = arith.mulf %26, %32 : vector<8x1xf32>
      %cst_27 = arith.constant 1.000000e+00 : f32
      %34 = vector.broadcast %cst_27 : f32 to vector<8x1xf32>
      %35 = arith.subf %34, %33 : vector<8x1xf32>
      %c0_28 = arith.constant 0 : index
      %c0_29 = arith.constant 0 : index
      %36 = vector.load %arg4[%c0_28, %c0_29] : memref<8x1xf32, #tpu.memory_space<vmem>>, vector<8x1xf32>
      tpu.vector_store %arg4[%c0_28, %c0_29], %35 {strides = array<i32>} : memref<8x1xf32, #tpu.memory_space<vmem>>, vector<8x1xf32>,
    } else {
    }
    return
  }
  func.func @transform_0(%arg0: i32, %arg1: i32) -> (i32, i32) {
    %c0_i32 = arith.constant 0 : i32
    return %arg0, %arg1 : i32, i32
  }
  func.func @transform_1(%arg0: i32, %arg1: i32) -> (i32, i32) {
    %c0_i32 = arith.constant 0 : i32
    return %arg0, %arg1 : i32, i32
  }
  func.func @transform_2(%arg0: i32, %arg1: i32) -> (i32, i32) {
    %c0_i32 = arith.constant 0 : i32
    %c0_i32_0 = arith.constant 0 : i32
    return %arg0, %c0_i32 : i32, i32
  }
}

</mosaic_0001>

<llo_original>
// kernel: tpu_custom_call.1
$region0: #{tpu_custom_call.1}
  #allocation0 [shape = 'u32[]', space=smem, size = 0x4, offset = 0x4, fixed_abs, tag = 'smem constant byte address 0x4 - core index']
  #allocation1 [shape = 'u32[144,128]{1,0:T(1,128)}', space=vmem, size = 0x12000, scoped, tag = 'internal scratch']
  #allocation2 [shape = 'f32[8,1]{1,0:T(8,128)}', space=vmem, size = 0x1000, scoped, tag = 'scratch operand']
  #allocation3 [shape = 'f32[8,1]{1,0:T(8,128)}', space=vmem, size = 0x1000, scoped, tag = 'scratch operand']
  #allocation4 [shape = 'f32[8,1]{1,0:T(8,128)}', space=vmem, size = 0x1000, scoped, tag = 'scratch operand']
  %s0 = inlined_call_operand.hbm [shape: f32[8,32], index: 0, kind: input, shape index: {}]
  %s1 = inlined_call_operand.hbm [shape: f32[8,32], index: 1, kind: input, shape index: {}]
  %s2 = inlined_call_operand.vmem [shape: f32[8,1], index: 2, kind: output, shape index: {}]
  %s3 = sld [smem:[#allocation0]]
  $region34: #{tpu_custom_call.1} parent=0
    _
  %s5 = ssub.s32 1, %s3
  %s6 = scalar_select 0, %s5, %s3
  $region1: #{tpu_custom_call.1} parent=0
    #allocation5 [shape = 'u8[4096]{0}', space=vmem, size = 0x1000, scoped, tag = 'input window, operand 0, single buffered']
    #allocation6 [shape = 's32[1]{0}', space=sflag, size = 0x4, scoped, tag = 'scoped memory for tpu_custom_call.1']
    #allocation7 [shape = 'u8[4096]{0}', space=vmem, size = 0x1000, scoped, tag = 'input window, operand 1, single buffered']
    #allocation8 [shape = 's32[1]{0}', space=sflag, size = 0x4, scoped, tag = 'scoped memory for tpu_custom_call.1']
    %7 = vsyncpa [#allocation6], 0
    %8 = vsyncpa [#allocation8], 0
    // Predicated region
    $region2: #{tpu_custom_call.1} parent=1 // pred_check
      _
    $region3: #{tpu_custom_call.1} parent=1 // pred_check_branch
      %10 = sbr.rel (0) target = $region5
    $region4: #{tpu_custom_call.1} parent=1 // pred_region
      %s12 = ssub.s32 128, 128
      %13 = vsyncadd [#allocation6], %s12
      %s15 = sshll.u32 [#allocation5], 4
      %s16 = int_to_ptr.vmem [resolvable:$true] %s15
      %18 = dma.hbm_to_vmem [thread:$0]  %s0, 128, %s16, [#allocation6]
    $region5: #{tpu_custom_call.1} parent=1 // pred_fallthru
      _
    // Predicated region
    $region6: #{tpu_custom_call.1} parent=1 // pred_check
      _
    $region7: #{tpu_custom_call.1} parent=1 // pred_check_branch
      %20 = sbr.rel (0) target = $region9
    $region8: #{tpu_custom_call.1} parent=1 // pred_region
      %s22 = ssub.s32 128, 128
      %23 = vsyncadd [#allocation8], %s22
      %s25 = sshll.u32 [#allocation7], 4
      %s26 = int_to_ptr.vmem [resolvable:$true] %s25
      %28 = dma.hbm_to_vmem [thread:$0]  %s1, 128, %s26, [#allocation8]
    $region9: #{tpu_custom_call.1} parent=1 // pred_fallthru
      _
    // Predicated region
    $region10: #{tpu_custom_call.1} parent=1 // pred_check
      _
    $region11: #{tpu_custom_call.1} parent=1 // pred_check_branch
      %30 = sbr.rel (0) target = $region13
    $region12: #{tpu_custom_call.1} parent=1 // pred_region
      %31 = dma.done [#allocation6], 128
    $region13: #{tpu_custom_call.1} parent=1 // pred_fallthru
      _
    // Predicated region
    $region14: #{tpu_custom_call.1} parent=1 // pred_check
      _
    $region15: #{tpu_custom_call.1} parent=1 // pred_check_branch
      %33 = sbr.rel (0) target = $region17
    $region16: #{tpu_custom_call.1} parent=1 // pred_region
      %34 = dma.done [#allocation8], 128
    $region17: #{tpu_custom_call.1} parent=1 // pred_fallthru
      _
    %p35 = scmp.eq.s32.totalorder 0, 0
    // Predicated region
    $region18: #{tpu_custom_call.1} parent=1 // pred_check
      %p36 = pneg %p35
    $region19: #{tpu_custom_call.1} parent=1 // pred_check_branch
      %38 = sbr.rel (%p36) target = $region21
    $region20: #{tpu_custom_call.1} parent=1 // pred_region
      %vm39 = vcmask 7168
      %40 = vst.msk [vmem:[#allocation2] sm:$0xff] %vm39, 0.0
      %41 = vst.msk [vmem:[#allocation3] sm:$0xff] %vm39, 0.0
      %42 = vst.msk [vmem:[#allocation4] sm:$0xff] %vm39, 0.0
    $region21: #{tpu_custom_call.1} parent=1 // pred_fallthru
      _
    %v43 = vld [vmem:[#allocation5] sm:$0xff]
    %v44 = vld [vmem:[#allocation7] sm:$0xff]
    %v45 = vld [vmem:[#allocation2] sm:$0xff]
    %v46 = vmul.f32 %v43, %v44
    %vm47 = vcmask 261120
    %v48 = vsel %vm47, %v46, 0.0
    %49 = vadd.xlane.f32.xlu0 %v48
    %v50 = vpop.xlane.xlu0 %49
    %v51 = vadd.f32 %v45, %v50
    %vm52 = vcmask 7168
    %53 = vst.msk [vmem:[#allocation2] sm:$0xff] %vm52, %v51
    %v54 = vld [vmem:[#allocation3] sm:$0xff]
    %v55 = vmul.f32 %v43, %v43
    %v56 = vsel %vm47, %v55, 0.0
    %57 = vadd.xlane.f32.xlu0 %v56
    %v58 = vpop.xlane.xlu0 %57
    %v59 = vadd.f32 %v54, %v58
    %60 = vst.msk [vmem:[#allocation3] sm:$0xff] %vm52, %v59
    %v61 = vld [vmem:[#allocation4] sm:$0xff]
    %v62 = vmul.f32 %v44, %v44
    %v63 = vsel %vm47, %v62, 0.0
    %64 = vadd.xlane.f32.xlu0 %v63
    %v65 = vpop.xlane.xlu0 %64
    %v66 = vadd.f32 %v61, %v65
    %67 = vst.msk [vmem:[#allocation4] sm:$0xff] %vm52, %v66
    // Predicated region
    $region22: #{tpu_custom_call.1} parent=1 // pred_check
      %p68 = pneg %p35
    $region23: #{tpu_custom_call.1} parent=1 // pred_check_branch
      %70 = sbr.rel (%p68) target = $region25
    $region24: #{tpu_custom_call.1} parent=1 // pred_region
      %v71 = vld [vmem:[#allocation2] sm:$0xff]
      %v72 = vld [vmem:[#allocation3] sm:$0xff]
      %v73 = vld [vmem:[#allocation4] sm:$0xff]
      %v74 = vmul.f32 %v72, %v73
      %v75 = vmax.f32 %v74, 1e-16
      %v76 = vrsqrt.pop %v75
      %v77 = vmul.f32 %v71, %v76
      %v78 = vsub.f32 1.0, %v77
      %79 = vst.msk [vmem:[%s2] sm:$0xff] %vm52, %v78
    $region25: #{tpu_custom_call.1} parent=1 // pred_fallthru
      _
    // Predicated region
    $region26: #{tpu_custom_call.1} parent=1 // pred_check
      _
    $region27: #{tpu_custom_call.1} parent=1 // pred_check_branch
      %81 = sbr.rel (0) target = $region29
    $region28: #{tpu_custom_call.1} parent=1 // pred_region
      _
    $region29: #{tpu_custom_call.1} parent=1 // pred_fallthru
      _
    // Predicated region
    $region30: #{tpu_custom_call.1} parent=1 // pred_check
      _
    $region31: #{tpu_custom_call.1} parent=1 // pred_check_branch
      %83 = sbr.rel (0) target = $region33
    $region32: #{tpu_custom_call.1} parent=1 // pred_region
      _
    $region33: #{tpu_custom_call.1} parent=1 // pred_fallthru
      _
    %84 = vsyncpa [#allocation6], 1
    %85 = vsyncpa [#allocation8], 1

</llo_original>
